<compile_context>
chip_gen: v6e
topology: v6e:2x2x1
jax: 0.10.0
libtpu: 0.0.40
codegen_flags: <defaults>
</compile_context>

<pallas_src>
import jax
import jax.numpy as jnp
from jax import lax
from jax.experimental import pallas as pl
from jax.experimental.pallas import tpu as pltpu

D_UV = 2
EMB = 8
D_IN = D_UV + EMB          # 10
HIDDEN = 32
D_OUT = 2

TN_MAX = 8192              # rows per grid step (rows -> MXU N / lanes); sweepable
MIN_GRID_STEPS = 2         # ensure >=2 parallel steps so v7x's 2 TCs both get work


def _round_up(n, m):
    return ((n + m - 1) // m) * m


def _warp_mlp_kernel(x_ref, wstk_ref, w1T_ref, w2aT_ref, w3T_ref,
                     b0_ref, b1_ref, b2_ref, b3_ref, o_ref):
    # x_ref: [TN, D_IN] row-major tile (rows in sublanes, 10 features in lanes).
    x = x_ref[...]

    # Layer 0 + the uvf-half of the skip layer in ONE MXU pass:
    #   wstk = [w0^T ; w2b^T] : [64, 10],  contract the feature axis of x
    #   directly ("A @ B^T" dimension numbers) -> feature-major [64, TN].
    g = lax.dot_general(wstk_ref[...], x,
                        dimension_numbers=(((1,), (1,)), ((), ())),
                        preferred_element_type=jnp.float32)        # [64, TN]

    h = jnp.maximum(g[:HIDDEN] + b0_ref[...], 0.0)                 # layer0 + ReLU
    skip = g[HIDDEN:]                                              # w2b @ uvf^T

    # layer 1: 32 -> 32, ReLU
    h = jnp.maximum(
        jnp.dot(w1T_ref[...], h, preferred_element_type=jnp.float32) + b1_ref[...],
        0.0)

    # layer 2 (skip): W2 @ cat([h, uvf]) == W2a @ h + W2b @ uvf
    h = jnp.maximum(
        jnp.dot(w2aT_ref[...], h, preferred_element_type=jnp.float32)
        + skip + b2_ref[...],
        0.0)

    # layer 3 (last): 32 -> 2, no activation
    o = jnp.dot(w3T_ref[...], h, preferred_element_type=jnp.float32) + b3_ref[...]
    o_ref[...] = o.astype(o_ref.dtype)                             # [2, TN] lane-dense


def local_warp(uvf, packed_params, tn=None):
    """uvf: [..., D_IN] float32. Returns warp: [..., D_OUT]."""
    lead_shape = uvf.shape[:-1]
    x = uvf.reshape(-1, D_IN)
    M = x.shape[0]

    if tn is None:
        # Largest tile <= TN_MAX that still yields >= MIN_GRID_STEPS parallel
        # grid steps (so both v7x TensorCores get work).  Rows are the MXU N /
        # lane dim, so tn must be a multiple of 128.
        tn = min(TN_MAX, max(128, _round_up(pl.cdiv(M, MIN_GRID_STEPS), 128)))
    else:
        tn = max(128, _round_up(int(tn), 128))      # validate caller-provided tn

    grid = pl.cdiv(M, tn)   # partial last block: reads padded, writes masked

    wstk, w1T, w2aT, w3T, b0c, b1c, b2c, b3c = packed_params

    flops_per_row = 2 * (D_IN * HIDDEN + HIDDEN * HIDDEN
                         + (HIDDEN + D_IN) * HIDDEN + HIDDEN * D_OUT)
    param_bytes = 4 * sum(int(p.size) for p in packed_params)
    cost = pl.CostEstimate(
        flops=flops_per_row * grid * tn,
        transcendentals=0,
        bytes_accessed=(D_IN + D_OUT) * 4 * M + param_bytes)

    out = pl.pallas_call(
        _warp_mlp_kernel,
        out_shape=jax.ShapeDtypeStruct((D_OUT, M), jnp.float32),
        grid_spec=pltpu.PrefetchScalarGridSpec(
            num_scalar_prefetch=0,
            grid=(grid,),
            in_specs=[
                pl.BlockSpec((tn, D_IN), lambda i: (i, 0)),      # streamed rows tile
                pl.BlockSpec(wstk.shape, lambda i: (0, 0)),      # resident [64,10]
                pl.BlockSpec(w1T.shape, lambda i: (0, 0)),       # resident [32,32]
                pl.BlockSpec(w2aT.shape, lambda i: (0, 0)),      # resident [32,32]
                pl.BlockSpec(w3T.shape, lambda i: (0, 0)),       # resident [2,32]
                pl.BlockSpec(b0c.shape, lambda i: (0, 0)),       # resident biases
                pl.BlockSpec(b1c.shape, lambda i: (0, 0)),
                pl.BlockSpec(b2c.shape, lambda i: (0, 0)),
                pl.BlockSpec(b3c.shape, lambda i: (0, 0)),
            ],
            out_specs=pl.BlockSpec((D_OUT, tn), lambda i: (0, i)),
        ),
        compiler_params=pltpu.CompilerParams(
            dimension_semantics=("parallel",),
            vmem_limit_bytes=40 * 1024 * 1024),
        cost_estimate=cost,
    )(x, wstk, w1T, w2aT, w3T, b0c, b1c, b2c, b3c)

    # Small channel-major -> row-major transpose of the [2, M] result.
    warp = out.T                                                   # [M, D_OUT]
    return warp.reshape(*lead_shape, D_OUT)


def init_params(key):
    """Deterministic raw parameter init (shapes match the torch module)."""
    ks = jax.random.split(key, 8)

    def lin(kw, kb, k_in, k_out):
        bound = 1.0 / jnp.sqrt(k_in)
        w = jax.random.uniform(kw, (k_in, k_out), jnp.float32, -bound, bound)
        b = jax.random.uniform(kb, (k_out,), jnp.float32, -bound, bound)
        return w, b

    w0, b0 = lin(ks[0], ks[1], D_IN, HIDDEN)
    w1, b1 = lin(ks[2], ks[3], HIDDEN, HIDDEN)
    w2, b2 = lin(ks[4], ks[5], HIDDEN + D_IN, HIDDEN)   # skip layer fan-in 42
    w3, b3 = lin(ks[6], ks[7], HIDDEN, D_OUT)
    return (w0, b0, w1, b1, w2, b2, w3, b3)


def pack_params(raw):
    """Repack raw (torch-layout) params into the kernel's transposed layout."""
    w0, b0, w1, b1, w2, b2, w3, b3 = raw
    w2a, w2b = w2[:HIDDEN], w2[HIDDEN:]     # feat-half / uvf-half of the skip layer
    # Stack layer0 and the uvf-half of the skip layer: one [64,10] MXU LHS.
    wstk = jnp.concatenate([w0.T, w2b.T], axis=0).astype(jnp.float32)   # [64, 10]
    w1T = w1.T.astype(jnp.float32)           # [32, 32]
    w2aT = w2a.T.astype(jnp.float32)         # [32, 32]
    w3T = w3.T.astype(jnp.float32)           # [2, 32]
    b0c = b0[:, None].astype(jnp.float32)    # [32, 1]
    b1c = b1[:, None].astype(jnp.float32)    # [32, 1]
    b2c = b2[:, None].astype(jnp.float32)    # [32, 1]
    b3c = b3[:, None].astype(jnp.float32)    # [2, 1]
    return wstk, w1T, w2aT, w3T, b0c, b1c, b2c, b3c


def reference(uvf, raw):
    """Pure-JAX replica of the torch forward (explicit concat, raw weights)."""
    w0, b0, w1, b1, w2, b2, w3, b3 = raw
    feat = uvf
    feat = jax.nn.relu(feat @ w0 + b0)
    feat = jax.nn.relu(feat @ w1 + b1)
    feat = jnp.concatenate([feat, uvf], axis=-1)        # skip at layer 2
    feat = jax.nn.relu(feat @ w2 + b2)
    return feat @ w3 + b3


if __name__ == "__main__":
    key = jax.random.PRNGKey(0)
    k_uvf, k_params = jax.random.split(key)

    raw_params = init_params(k_params)
    packed_params = pack_params(raw_params)

    # uvf: [B, H*W, 2 + embedding_dim]  (B=2, 16x16 pixel grid, emb=8) -> M=512,
    # giving tn=256 and a 2-step "parallel" grid (both v7x TCs busy).
    B, HW = 2, 16 * 16
    uvf = jax.random.normal(k_uvf, (B, HW, D_IN), dtype=jnp.float32)

    warp = jax.block_until_ready(local_warp(uvf, packed_params))
    ref = reference(uvf, raw_params)
    assert warp.shape == (B, HW, D_OUT)
    assert jnp.allclose(warp, ref, rtol=1e-5, atol=1e-5)

    # Ragged row count (not a multiple of the lane tile): exercises the cdiv
    # grid with a masked partial last block (no padding to a tn multiple).
    uvf2 = jax.random.normal(jax.random.PRNGKey(1), (300, D_IN), dtype=jnp.float32)
    warp2 = jax.block_until_ready(local_warp(uvf2, packed_params))
    ref2 = reference(uvf2, raw_params)
    assert warp2.shape == (300, D_OUT)
    assert jnp.allclose(warp2, ref2, rtol=1e-5, atol=1e-5)

    print("KERNEL_OK")
</pallas_src>

<mosaic_0001>
module attributes {stable_mosaic.version = 11 : i64} {
  func.func @_warp_mlp_kernel(%arg0: i32, %arg1: memref<256x10xf32, #tpu.memory_space<vmem>>, %arg2: memref<64x10xf32, #tpu.memory_space<vmem>>, %arg3: memref<32x32xf32, #tpu.memory_space<vmem>>, %arg4: memref<32x32xf32, #tpu.memory_space<vmem>>, %arg5: memref<2x32xf32, #tpu.memory_space<vmem>>, %arg6: memref<32x1xf32, #tpu.memory_space<vmem>>, %arg7: memref<32x1xf32, #tpu.memory_space<vmem>>, %arg8: memref<32x1xf32, #tpu.memory_space<vmem>>, %arg9: memref<2x1xf32, #tpu.memory_space<vmem>>, %arg10: memref<2x256xf32, #tpu.memory_space<vmem>>) attributes {dimension_semantics = [#tpu.dimension_semantics<parallel>], iteration_bounds = array<i64: 2>, scalar_prefetch = 0 : i64, scratch_operands = 0 : i64, tpu.core_type = #tpu.core_type<tc>, window_params = [{transform_indices = @transform_0, window_bounds = array<i64: 256, 10>}, {pipeline_mode = #tpu.pipeline_mode<synchronous>, transform_indices = @transform_1, window_bounds = array<i64: 64, 10>}, {pipeline_mode = #tpu.pipeline_mode<synchronous>, transform_indices = @transform_2, window_bounds = array<i64: 32, 32>}, {pipeline_mode = #tpu.pipeline_mode<synchronous>, transform_indices = @transform_3, window_bounds = array<i64: 32, 32>}, {pipeline_mode = #tpu.pipeline_mode<synchronous>, transform_indices = @transform_4, window_bounds = array<i64: 2, 32>}, {pipeline_mode = #tpu.pipeline_mode<synchronous>, transform_indices = @transform_5, window_bounds = array<i64: 32, 1>}, {pipeline_mode = #tpu.pipeline_mode<synchronous>, transform_indices = @transform_6, window_bounds = array<i64: 32, 1>}, {pipeline_mode = #tpu.pipeline_mode<synchronous>, transform_indices = @transform_7, window_bounds = array<i64: 32, 1>}, {pipeline_mode = #tpu.pipeline_mode<synchronous>, transform_indices = @transform_8, window_bounds = array<i64: 2, 1>}, {transform_indices = @transform_9, window_bounds = array<i64: 2, 256>}]} {
    %c0 = arith.constant 0 : index
    %c0_0 = arith.constant 0 : index
    %0 = vector.load %arg1[%c0, %c0_0] : memref<256x10xf32, #tpu.memory_space<vmem>>, vector<256x10xf32>
    %c0_1 = arith.constant 0 : index
    %c0_2 = arith.constant 0 : index
    %1 = vector.load %arg2[%c0_1, %c0_2] : memref<64x10xf32, #tpu.memory_space<vmem>>, vector<64x10xf32>
    %cst = arith.constant dense<0.000000e+00> : vector<64x256xf32>
    %2 = tpu.matmul %1, %0, %cst {dimension_numbers = #tpu.dot_dimension_numbers<[1], [1], [0], [0], [0, 0, 1, 0], [], []>} : vector<64x10xf32>, vector<256x10xf32>, vector<64x256xf32> -> vector<64x256xf32>
    %3 = vector.extract_strided_slice %2 {offsets = [0, 0], sizes = [32, 256], strides = [1, 1]} : vector<64x256xf32> to vector<32x256xf32>
    %c0_3 = arith.constant 0 : index
    %c0_4 = arith.constant 0 : index
    %4 = vector.load %arg6[%c0_3, %c0_4] : memref<32x1xf32, #tpu.memory_space<vmem>>, vector<32x1xf32>
    %5 = vector.broadcast %4 : vector<32x1xf32> to vector<32x256xf32>
    %6 = arith.addf %3, %5 : vector<32x256xf32>
    %cst_5 = arith.constant 0.000000e+00 : f32
    %7 = vector.broadcast %cst_5 : f32 to vector<32x256xf32>
    %8 = arith.maximumf %6, %7 : vector<32x256xf32>
    %9 = vector.extract_strided_slice %2 {offsets = [32, 0], sizes = [32, 256], strides = [1, 1]} : vector<64x256xf32> to vector<32x256xf32>
    %c0_6 = arith.constant 0 : index
    %c0_7 = arith.constant 0 : index
    %10 = vector.load %arg3[%c0_6, %c0_7] : memref<32x32xf32, #tpu.memory_space<vmem>>, vector<32x32xf32>
    %cst_8 = arith.constant dense<0.000000e+00> : vector<32x256xf32>
    %11 = tpu.matmul %10, %8, %cst_8 {dimension_numbers = #tpu.dot_dimension_numbers<[1], [0], [0], [1], [0, 0, 1, 1], [], []>} : vector<32x32xf32>, vector<32x256xf32>, vector<32x256xf32> -> vector<32x256xf32>
    %c0_9 = arith.constant 0 : index
    %c0_10 = arith.constant 0 : index
    %12 = vector.load %arg7[%c0_9, %c0_10] : memref<32x1xf32, #tpu.memory_space<vmem>>, vector<32x1xf32>
    %13 = vector.broadcast %12 : vector<32x1xf32> to vector<32x256xf32>
    %14 = arith.addf %11, %13 : vector<32x256xf32>
    %cst_11 = arith.constant 0.000000e+00 : f32
    %15 = vector.broadcast %cst_11 : f32 to vector<32x256xf32>
    %16 = arith.maximumf %14, %15 : vector<32x256xf32>
    %c0_12 = arith.constant 0 : index
    %c0_13 = arith.constant 0 : index
    %17 = vector.load %arg4[%c0_12, %c0_13] : memref<32x32xf32, #tpu.memory_space<vmem>>, vector<32x32xf32>
    %cst_14 = arith.constant dense<0.000000e+00> : vector<32x256xf32>
    %18 = tpu.matmul %17, %16, %cst_14 {dimension_numbers = #tpu.dot_dimension_numbers<[1], [0], [0], [1], [0, 0, 1, 1], [], []>} : vector<32x32xf32>, vector<32x256xf32>, vector<32x256xf32> -> vector<32x256xf32>
    %19 = arith.addf %18, %9 : vector<32x256xf32>
    %c0_15 = arith.constant 0 : index
    %c0_16 = arith.constant 0 : index
    %20 = vector.load %arg8[%c0_15, %c0_16] : memref<32x1xf32, #tpu.memory_space<vmem>>, vector<32x1xf32>
    %21 = vector.broadcast %20 : vector<32x1xf32> to vector<32x256xf32>
    %22 = arith.addf %19, %21 : vector<32x256xf32>
    %cst_17 = arith.constant 0.000000e+00 : f32
    %23 = vector.broadcast %cst_17 : f32 to vector<32x256xf32>
    %24 = arith.maximumf %22, %23 : vector<32x256xf32>
    %c0_18 = arith.constant 0 : index
    %c0_19 = arith.constant 0 : index
    %25 = vector.load %arg5[%c0_18, %c0_19] : memref<2x32xf32, #tpu.memory_space<vmem>>, vector<2x32xf32>
    %cst_20 = arith.constant dense<0.000000e+00> : vector<2x256xf32>
    %26 = tpu.matmul %25, %24, %cst_20 {dimension_numbers = #tpu.dot_dimension_numbers<[1], [0], [0], [1], [0, 0, 1, 1], [], []>} : vector<2x32xf32>, vector<32x256xf32>, vector<2x256xf32> -> vector<2x256xf32>
    %c0_21 = arith.constant 0 : index
    %c0_22 = arith.constant 0 : index
    %27 = vector.load %arg9[%c0_21, %c0_22] : memref<2x1xf32, #tpu.memory_space<vmem>>, vector<2x1xf32>
    %28 = vector.broadcast %27 : vector<2x1xf32> to vector<2x256xf32>
    %29 = arith.addf %26, %28 : vector<2x256xf32>
    %c0_23 = arith.constant 0 : index
    %c0_24 = arith.constant 0 : index
    %30 = vector.load %arg10[%c0_23, %c0_24] : memref<2x256xf32, #tpu.memory_space<vmem>>, vector<2x256xf32>
    tpu.vector_store %arg10[%c0_23, %c0_24], %29 {strides = array<i32>} : memref<2x256xf32, #tpu.memory_space<vmem>>, vector<2x256xf32>,
    return
  }
  func.func @transform_0(%arg0: i32) -> (i32, i32) {
    %c0_i32 = arith.constant 0 : i32
    %c0_i32_0 = arith.constant 0 : i32
    return %arg0, %c0_i32 : i32, i32
  }
  func.func @transform_1(%arg0: i32) -> (i32, i32) {
    %c0_i32 = arith.constant 0 : i32
    %c0_i32_0 = arith.constant 0 : i32
    %c0_i32_1 = arith.constant 0 : i32
    return %c0_i32, %c0_i32_0 : i32, i32
  }
  func.func @transform_2(%arg0: i32) -> (i32, i32) {
    %c0_i32 = arith.constant 0 : i32
    %c0_i32_0 = arith.constant 0 : i32
    %c0_i32_1 = arith.constant 0 : i32
    return %c0_i32, %c0_i32_0 : i32, i32
  }
  func.func @transform_3(%arg0: i32) -> (i32, i32) {
    %c0_i32 = arith.constant 0 : i32
    %c0_i32_0 = arith.constant 0 : i32
    %c0_i32_1 = arith.constant 0 : i32
    return %c0_i32, %c0_i32_0 : i32, i32
  }
  func.func @transform_4(%arg0: i32) -> (i32, i32) {
    %c0_i32 = arith.constant 0 : i32
    %c0_i32_0 = arith.constant 0 : i32
    %c0_i32_1 = arith.constant 0 : i32
    return %c0_i32, %c0_i32_0 : i32, i32
  }
  func.func @transform_5(%arg0: i32) -> (i32, i32) {
    %c0_i32 = arith.constant 0 : i32
    %c0_i32_0 = arith.constant 0 : i32
    %c0_i32_1 = arith.constant 0 : i32
    return %c0_i32, %c0_i32_0 : i32, i32
  }
  func.func @transform_6(%arg0: i32) -> (i32, i32) {
    %c0_i32 = arith.constant 0 : i32
    %c0_i32_0 = arith.constant 0 : i32
    %c0_i32_1 = arith.constant 0 : i32
    return %c0_i32, %c0_i32_0 : i32, i32
  }
  func.func @transform_7(%arg0: i32) -> (i32, i32) {
    %c0_i32 = arith.constant 0 : i32
    %c0_i32_0 = arith.constant 0 : i32
    %c0_i32_1 = arith.constant 0 : i32
    return %c0_i32, %c0_i32_0 : i32, i32
  }
  func.func @transform_8(%arg0: i32) -> (i32, i32) {
    %c0_i32 = arith.constant 0 : i32
    %c0_i32_0 = arith.constant 0 : i32
    %c0_i32_1 = arith.constant 0 : i32
    return %c0_i32, %c0_i32_0 : i32, i32
  }
  func.func @transform_9(%arg0: i32) -> (i32, i32) {
    %c0_i32 = arith.constant 0 : i32
    %c0_i32_0 = arith.constant 0 : i32
    return %c0_i32, %arg0 : i32, i32
  }
}

</mosaic_0001>

<llo_original>
// kernel: tpu_custom_call.1
$region0: #{tpu_custom_call.1}
  #allocation0 [shape = 'u32[]', space=smem, size = 0x4, offset = 0x4, fixed_abs, tag = 'smem constant byte address 0x4 - core index']
  #allocation1 [shape = 'u32[144,128]{1,0:T(1,128)}', space=vmem, size = 0x12000, scoped, tag = 'internal scratch']
  %s0 = inlined_call_operand.vmem [shape: f32[512,10], index: 0, kind: input, shape index: {}]
  %s1 = inlined_call_operand.vmem [shape: f32[64,10], index: 1, kind: input, shape index: {}]
  %s2 = inlined_call_operand.vmem [shape: f32[32,32], index: 2, kind: input, shape index: {}]
  %s3 = inlined_call_operand.vmem [shape: f32[32,32], index: 3, kind: input, shape index: {}]
  %s4 = inlined_call_operand.vmem [shape: f32[2,32], index: 4, kind: input, shape index: {}]
  %s5 = inlined_call_operand.vmem [shape: f32[32,1], index: 5, kind: input, shape index: {}]
  %s6 = inlined_call_operand.vmem [shape: f32[32,1], index: 6, kind: input, shape index: {}]
  %s7 = inlined_call_operand.vmem [shape: f32[32,1], index: 7, kind: input, shape index: {}]
  %s8 = inlined_call_operand.vmem [shape: f32[2,1], index: 8, kind: input, shape index: {}]
  %s9 = inlined_call_operand.hbm [shape: f32[2,512], index: 9, kind: output, shape index: {}]
  %s10 = sld [smem:[#allocation0]]
  $region69: #{tpu_custom_call.1} parent=0
    _
  %s12 = ssub.s32 1, %s10
  %s13 = scalar_select 0, %s12, %s10
  $region1: #{tpu_custom_call.1} parent=0
    #allocation2 [shape = 'u8[4096]{0}', space=vmem, size = 0x1000, scoped, tag = 'output window, operand 0']
    #allocation3 [shape = 's32[2]{0}', space=sflag, size = 0x8, scoped, tag = 'scoped memory for tpu_custom_call.1']
    %14 = vsyncpa [#allocation3], 0
    %s15 = scalar_lea.sflag [#allocation3], 1
    %16 = vsyncpa %s15, 0
    loop: start=0, step=1, limit=4
    $region2: #{tpu_custom_call.1} parent=1 // loop_pre_header
      _
    $region3: #{tpu_custom_call.1} parent=1 // loop_header
      %s18 = sphi 0, %s22
      %p19 = scmp.ge.s32.totalorder %s18, 4
      %s28 = sphi 0, %s30
      %s31 = sphi 0, %s28
      %s32 = sphi 0, %s31
      %s48 = sphi 0, %s32
      %s52 = sphi 0, %s52
      %s54 = sphi 0, %s52
      %s55 = sphi 0, %s54
      %s69 = sphi 0, %s55
      %s73 = sphi 0, %s73
      %s75 = sphi 0, %s73
      %s76 = sphi 0, %s75
      %s90 = sphi 0, %s76
      %s94 = sphi 0, %s94
      %s96 = sphi 0, %s94
      %s97 = sphi 0, %s96
      %s111 = sphi 0, %s97
      %s115 = sphi 0, %s115
      %s117 = sphi 0, %s115
      %s118 = sphi 0, %s117
      %s132 = sphi 0, %s118
      %s136 = sphi 0, %s136
      %s138 = sphi 0, %s136
      %s139 = sphi 0, %s138
      %s153 = sphi 0, %s139
      %s157 = sphi 0, %s157
      %s159 = sphi 0, %s157
      %s160 = sphi 0, %s159
      %s174 = sphi 0, %s160
      %s178 = sphi 0, %s178
      %s180 = sphi 0, %s178
      %s181 = sphi 0, %s180
      %s195 = sphi 0, %s181
      %s199 = sphi 0, %s199
      %s201 = sphi 0, %s199
      %s202 = sphi 0, %s201
      %s216 = sphi 0, %s202
      %s222 = sphi 0, %s224
      %s225 = sphi 0, %s222
      %s226 = sphi 0, %s225
      %s242 = sphi 0, %s226
    $region4: #{tpu_custom_call.1} parent=1 // loop_header_branch
      %21 = sbr.rel (%p19) target = $region8
    $region5: #{tpu_custom_call.1} parent=1 // loop_body
      %s23 = ssub.s32 %s18, 1
      %s24 = ssub.s32 %s18, 2
      %s25 = sadd.s32 %s18, 1
      %s26 = ssub.s32 %s18, %s25
      %p27 = scmp.eq.s32.totalorder %s26, 0
      %s29 = sadd.s32 %s28, 1
      %s30 = scalar_select %p27, %s28, %s29
      %p33 = pneg %p27
      %p34 = scmp.eq.s32.totalorder %s18, 1
      %p35 = por %p33, %p34
      %p36 = scmp.ne.s32.totalorder %s28, %s31
      %p37 = scmp.eq.s32.totalorder %s18, 0
      %p38 = por %p36, %p37
      %p39 = scmp.ne.s32.totalorder %s28, %s31
      %p40 = scmp.eq.s32.totalorder %s23, 1
      %p41 = por %p39, %p40
      %p42 = scmp.ne.s32.totalorder %s31, %s32
      %p43 = scmp.eq.s32.totalorder %s23, 0
      %p44 = por %p42, %p43
      %p45 = scmp.ne.s32.totalorder %s31, %s32
      %p46 = scmp.eq.s32.totalorder %s24, 1
      %p47 = por %p45, %p46
      %p49 = scmp.ne.s32.totalorder %s32, %s48
      %p50 = scmp.eq.s32.totalorder %s24, 0
      %p51 = por %p49, %p50
      %s53 = sadd.s32 %s52, 1
      %p56 = scmp.eq.s32.totalorder %s18, 1
      %p57 = scmp.ne.s32.totalorder %s52, %s54
      %p58 = scmp.eq.s32.totalorder %s18, 0
      %p59 = por %p57, %p58
      %p60 = scmp.ne.s32.totalorder %s52, %s54
      %p61 = scmp.eq.s32.totalorder %s23, 1
      %p62 = por %p60, %p61
      %p63 = scmp.ne.s32.totalorder %s54, %s55
      %p64 = scmp.eq.s32.totalorder %s23, 0
      %p65 = por %p63, %p64
      %p66 = scmp.ne.s32.totalorder %s54, %s55
      %p67 = scmp.eq.s32.totalorder %s24, 1
      %p68 = por %p66, %p67
      %p70 = scmp.ne.s32.totalorder %s55, %s69
      %p71 = scmp.eq.s32.totalorder %s24, 0
      %p72 = por %p70, %p71
      %s74 = sadd.s32 %s73, 1
      %p77 = scmp.eq.s32.totalorder %s18, 1
      %p78 = scmp.ne.s32.totalorder %s73, %s75
      %p79 = scmp.eq.s32.totalorder %s18, 0
      %p80 = por %p78, %p79
      %p81 = scmp.ne.s32.totalorder %s73, %s75
      %p82 = scmp.eq.s32.totalorder %s23, 1
      %p83 = por %p81, %p82
      %p84 = scmp.ne.s32.totalorder %s75, %s76
      %p85 = scmp.eq.s32.totalorder %s23, 0
      %p86 = por %p84, %p85
      %p87 = scmp.ne.s32.totalorder %s75, %s76
      %p88 = scmp.eq.s32.totalorder %s24, 1
      %p89 = por %p87, %p88
      %p91 = scmp.ne.s32.totalorder %s76, %s90
      %p92 = scmp.eq.s32.totalorder %s24, 0
      %p93 = por %p91, %p92
      %s95 = sadd.s32 %s94, 1
      %p98 = scmp.eq.s32.totalorder %s18, 1
      %p99 = scmp.ne.s32.totalorder %s94, %s96
      %p100 = scmp.eq.s32.totalorder %s18, 0
      %p101 = por %p99, %p100
      %p102 = scmp.ne.s32.totalorder %s94, %s96
      %p103 = scmp.eq.s32.totalorder %s23, 1
      %p104 = por %p102, %p103
      %p105 = scmp.ne.s32.totalorder %s96, %s97
      %p106 = scmp.eq.s32.totalorder %s23, 0
      %p107 = por %p105, %p106
      %p108 = scmp.ne.s32.totalorder %s96, %s97
      %p109 = scmp.eq.s32.totalorder %s24, 1
      %p110 = por %p108, %p109
      %p112 = scmp.ne.s32.totalorder %s97, %s111
      %p113 = scmp.eq.s32.totalorder %s24, 0
      %p114 = por %p112, %p113
      %s116 = sadd.s32 %s115, 1
      %p119 = scmp.eq.s32.totalorder %s18, 1
      %p120 = scmp.ne.s32.totalorder %s115, %s117
      %p121 = scmp.eq.s32.totalorder %s18, 0
      %p122 = por %p120, %p121
      %p123 = scmp.ne.s32.totalorder %s115, %s117
      %p124 = scmp.eq.s32.totalorder %s23, 1
      %p125 = por %p123, %p124
      %p126 = scmp.ne.s32.totalorder %s117, %s118
      %p127 = scmp.eq.s32.totalorder %s23, 0
      %p128 = por %p126, %p127
      %p129 = scmp.ne.s32.totalorder %s117, %s118
      %p130 = scmp.eq.s32.totalorder %s24, 1
      %p131 = por %p129, %p130
      %p133 = scmp.ne.s32.totalorder %s118, %s132
      %p134 = scmp.eq.s32.totalorder %s24, 0
      %p135 = por %p133, %p134
      %s137 = sadd.s32 %s136, 1
      %p140 = scmp.eq.s32.totalorder %s18, 1
      %p141 = scmp.ne.s32.totalorder %s136, %s138
      %p142 = scmp.eq.s32.totalorder %s18, 0
      %p143 = por %p141, %p142
      %p144 = scmp.ne.s32.totalorder %s136, %s138
      %p145 = scmp.eq.s32.totalorder %s23, 1
      %p146 = por %p144, %p145
      %p147 = scmp.ne.s32.totalorder %s138, %s139
      %p148 = scmp.eq.s32.totalorder %s23, 0
      %p149 = por %p147, %p148
      %p150 = scmp.ne.s32.totalorder %s138, %s139
      %p151 = scmp.eq.s32.totalorder %s24, 1
      %p152 = por %p150, %p151
      %p154 = scmp.ne.s32.totalorder %s139, %s153
      %p155 = scmp.eq.s32.totalorder %s24, 0
      %p156 = por %p154, %p155
      %s158 = sadd.s32 %s157, 1
      %p161 = scmp.eq.s32.totalorder %s18, 1
      %p162 = scmp.ne.s32.totalorder %s157, %s159
      %p163 = scmp.eq.s32.totalorder %s18, 0
      %p164 = por %p162, %p163
      %p165 = scmp.ne.s32.totalorder %s157, %s159
      %p166 = scmp.eq.s32.totalorder %s23, 1
      %p167 = por %p165, %p166
      %p168 = scmp.ne.s32.totalorder %s159, %s160
      %p169 = scmp.eq.s32.totalorder %s23, 0
      %p170 = por %p168, %p169
      %p171 = scmp.ne.s32.totalorder %s159, %s160
      %p172 = scmp.eq.s32.totalorder %s24, 1
      %p173 = por %p171, %p172
      %p175 = scmp.ne.s32.totalorder %s160, %s174
      %p176 = scmp.eq.s32.totalorder %s24, 0
      %p177 = por %p175, %p176
      %s179 = sadd.s32 %s178, 1
      %p182 = scmp.eq.s32.totalorder %s18, 1
      %p183 = scmp.ne.s32.totalorder %s178, %s180
      %p184 = scmp.eq.s32.totalorder %s18, 0
      %p185 = por %p183, %p184
      %p186 = scmp.ne.s32.totalorder %s178, %s180
      %p187 = scmp.eq.s32.totalorder %s23, 1
      %p188 = por %p186, %p187
      %p189 = scmp.ne.s32.totalorder %s180, %s181
      %p190 = scmp.eq.s32.totalorder %s23, 0
      %p191 = por %p189, %p190
      %p192 = scmp.ne.s32.totalorder %s180, %s181
      %p193 = scmp.eq.s32.totalorder %s24, 1
      %p194 = por %p192, %p193
      %p196 = scmp.ne.s32.totalorder %s181, %s195
      %p197 = scmp.eq.s32.totalorder %s24, 0
      %p198 = por %p196, %p197
      %s200 = sadd.s32 %s199, 1
      %p203 = scmp.eq.s32.totalorder %s18, 1
      %p204 = scmp.ne.s32.totalorder %s199, %s201
      %p205 = scmp.eq.s32.totalorder %s18, 0
      %p206 = por %p204, %p205
      %p207 = scmp.ne.s32.totalorder %s199, %s201
      %p208 = scmp.eq.s32.totalorder %s23, 1
      %p209 = por %p207, %p208
      %p210 = scmp.ne.s32.totalorder %s201, %s202
      %p211 = scmp.eq.s32.totalorder %s23, 0
      %p212 = por %p210, %p211
      %p213 = scmp.ne.s32.totalorder %s201, %s202
      %p214 = scmp.eq.s32.totalorder %s24, 1
      %p215 = por %p213, %p214
      %p217 = scmp.ne.s32.totalorder %s202, %s216
      %p218 = scmp.eq.s32.totalorder %s24, 0
      %p219 = por %p217, %p218
      %s220 = ssub.s32 %s18, %s25
      %p221 = scmp.eq.s32.totalorder %s220, 0
      %s223 = sadd.s32 %s222, 1
      %s224 = scalar_select %p221, %s222, %s223
      %p227 = pneg %p221
      %p228 = scmp.eq.s32.totalorder %s18, 1
      %p229 = por %p227, %p228
      %p230 = scmp.ne.s32.totalorder %s222, %s225
      %p231 = scmp.eq.s32.totalorder %s18, 0
      %p232 = por %p230, %p231
      %p233 = scmp.ne.s32.totalorder %s222, %s225
      %p234 = scmp.eq.s32.totalorder %s23, 1
      %p235 = por %p233, %p234
      %p236 = scmp.ne.s32.totalorder %s225, %s226
      %p237 = scmp.eq.s32.totalorder %s23, 0
      %p238 = por %p236, %p237
      %p239 = scmp.ne.s32.totalorder %s225, %s226
      %p240 = scmp.eq.s32.totalorder %s24, 1
      %p241 = por %p239, %p240
      %p243 = scmp.ne.s32.totalorder %s226, %s242
      %p244 = scmp.eq.s32.totalorder %s24, 0
      %p245 = por %p243, %p244
      %p246 = scmp.le.s32.totalorder 1, %s18
      %p247 = scmp.lt.s32.totalorder %s18, 3
      %p248 = pnand %p246, %p247
      %p249 = pneg %p248
      // Predicated region
      $region9: #{tpu_custom_call.1} parent=5 // pred_check
        _
      $region10: #{tpu_custom_call.1} parent=5 // pred_check_branch
        %251 = sbr.rel (%p248) target = $region12
      $region11: #{tpu_custom_call.1} parent=5 // pred_region
        %s252 = ssub.s32 %s18, 1
        // Predicated region
        $region13: #{tpu_custom_call.1} parent=11 // pred_check
          %p253 = pneg %p65
        $region14: #{tpu_custom_call.1} parent=11 // pred_check_branch
          %255 = sbr.rel (%p253) target = $region16
        $region15: #{tpu_custom_call.1} parent=11 // pred_region
          _
        $region16: #{tpu_custom_call.1} parent=11 // pred_fallthru
          _
        // Predicated region
        $region17: #{tpu_custom_call.1} parent=11 // pred_check
          %p256 = pneg %p86
        $region18: #{tpu_custom_call.1} parent=11 // pred_check_branch
          %258 = sbr.rel (%p256) target = $region20
        $region19: #{tpu_custom_call.1} parent=11 // pred_region
          _
        $region20: #{tpu_custom_call.1} parent=11 // pred_fallthru
          _
        // Predicated region
        $region21: #{tpu_custom_call.1} parent=11 // pred_check
          %p259 = pneg %p107
        $region22: #{tpu_custom_call.1} parent=11 // pred_check_branch
          %261 = sbr.rel (%p259) target = $region24
        $region23: #{tpu_custom_call.1} parent=11 // pred_region
          _
        $region24: #{tpu_custom_call.1} parent=11 // pred_fallthru
          _
        // Predicated region
        $region25: #{tpu_custom_call.1} parent=11 // pred_check
          %p262 = pneg %p128
        $region26: #{tpu_custom_call.1} parent=11 // pred_check_branch
          %264 = sbr.rel (%p262) target = $region28
        $region27: #{tpu_custom_call.1} parent=11 // pred_region
          _
        $region28: #{tpu_custom_call.1} parent=11 // pred_fallthru
          _
        // Predicated region
        $region29: #{tpu_custom_call.1} parent=11 // pred_check
          %p265 = pneg %p149
        $region30: #{tpu_custom_call.1} parent=11 // pred_check_branch
          %267 = sbr.rel (%p265) target = $region32
        $region31: #{tpu_custom_call.1} parent=11 // pred_region
          _
        $region32: #{tpu_custom_call.1} parent=11 // pred_fallthru
          _
        // Predicated region
        $region33: #{tpu_custom_call.1} parent=11 // pred_check
          %p268 = pneg %p170
        $region34: #{tpu_custom_call.1} parent=11 // pred_check_branch
          %270 = sbr.rel (%p268) target = $region36
        $region35: #{tpu_custom_call.1} parent=11 // pred_region
          _
        $region36: #{tpu_custom_call.1} parent=11 // pred_fallthru
          _
        // Predicated region
        $region37: #{tpu_custom_call.1} parent=11 // pred_check
          %p271 = pneg %p191
        $region38: #{tpu_custom_call.1} parent=11 // pred_check_branch
          %273 = sbr.rel (%p271) target = $region40
        $region39: #{tpu_custom_call.1} parent=11 // pred_region
          _
        $region40: #{tpu_custom_call.1} parent=11 // pred_fallthru
          _
        // Predicated region
        $region41: #{tpu_custom_call.1} parent=11 // pred_check
          %p274 = pneg %p212
        $region42: #{tpu_custom_call.1} parent=11 // pred_check_branch
          %276 = sbr.rel (%p274) target = $region44
        $region43: #{tpu_custom_call.1} parent=11 // pred_region
          _
        $region44: #{tpu_custom_call.1} parent=11 // pred_fallthru
          _
      $region12: #{tpu_custom_call.1} parent=5 // pred_fallthru
        _
      %p277 = scmp.lt.s32.totalorder %s18, 2
      // Predicated region
      $region45: #{tpu_custom_call.1} parent=5 // pred_check
        %p278 = pneg %p277
      $region46: #{tpu_custom_call.1} parent=5 // pred_check_branch
        %280 = sbr.rel (%p278) target = $region48
      $region47: #{tpu_custom_call.1} parent=5 // pred_region
        // Predicated region
        $region49: #{tpu_custom_call.1} parent=47 // pred_check
          %p281 = pneg %p38
        $region50: #{tpu_custom_call.1} parent=47 // pred_check_branch
          %283 = sbr.rel (%p281) target = $region52
        $region51: #{tpu_custom_call.1} parent=47 // pred_region
          %s284 = smul.u32 32, %s18
          %p285 = scmp.lt.s32.totalorder %s284, 63
          %s286 = scalar_select %p285, %s284, 63
          %s287 = smul.addr %s286, 8
          %s288 = scalar_lea.vmem %s0, %s287
          %s289 = smul.u32 32, %s18
        $region52: #{tpu_custom_call.1} parent=47 // pred_fallthru
          _
      $region48: #{tpu_custom_call.1} parent=5 // pred_fallthru
        _
      %p290 = scmp.le.s32.totalorder 1, %s18
      %p291 = scmp.lt.s32.totalorder %s18, 3
      %p292 = pnand %p290, %p291
      %p293 = pneg %p292
      // Predicated region
      $region53: #{tpu_custom_call.1} parent=5 // pred_check
        _
      $region54: #{tpu_custom_call.1} parent=5 // pred_check_branch
        %295 = sbr.rel (%p292) target = $region56
      $region55: #{tpu_custom_call.1} parent=5 // pred_region
        %s296 = ssub.s32 %s18, 1
        %s297 = smul.u32 32, %s23
        %p298 = scmp.lt.s32.totalorder %s297, 63
        %s299 = scalar_select %p298, %s297, 63
        %s300 = smul.addr %s299, 8
        %s301 = scalar_lea.vmem %s0, %s300
        %p302 = pneg %p44
        %p303 = pneg %p41
        %p304 = pneg %p65
        %p305 = pneg %p62
        %p306 = pneg %p86
        %p307 = pneg %p83
        %p308 = pneg %p107
        %p309 = pneg %p104
        %p310 = pneg %p128
        %p311 = pneg %p125
        %p312 = pneg %p149
        %p313 = pneg %p146
        %p314 = pneg %p170
        %p315 = pneg %p167
        %p316 = pneg %p191
        %p317 = pneg %p188
        %p318 = pneg %p212
        %p319 = pneg %p209
        %p320 = pneg %p238
        %p321 = pneg %p235
        %s322 = sand.u32 %s225, 1
        %s323 = scalar_lea.sflag [#allocation3], %s322
        %s324 = sand.u32 %s225, 1
        %s325 = smul.addr %s324, 4
        %s326 = scalar_lea.vmem [#allocation2], %s325
        %s327 = smul.u32 32, %s23
        %p328 = scmp.lt.s32.totalorder %s327, 63
        %s329 = scalar_select %p328, %s327, 63
        %s330 = smul.addr %s329, 8
        %s331 = scalar_lea.vmem %s0, %s330
        %s332 = smul.u32 32, %s23
        %s333 = smul.u32 2, %s23
        %v334 = vld [vmem:[%s331] sm:$0xff]
        %v335 = vld [vmem:[%s331 + $0x8] sm:$0xff]
        %v336 = vld [vmem:[%s331 + $0x10] sm:$0xff]
        %v337 = vld [vmem:[%s331 + $0x18] sm:$0xff]
        %v338 = vld [vmem:[%s331 + $0x20] sm:$0xff]
        %v339 = vld [vmem:[%s331 + $0x28] sm:$0xff]
        %v340 = vld [vmem:[%s331 + $0x30] sm:$0xff]
        %v341 = vld [vmem:[%s331 + $0x38] sm:$0xff]
        %v342 = vld [vmem:[%s331 + $0x40] sm:$0xff]
        %v343 = vld [vmem:[%s331 + $0x48] sm:$0xff]
        %v344 = vld [vmem:[%s331 + $0x50] sm:$0xff]
        %v345 = vld [vmem:[%s331 + $0x58] sm:$0xff]
        %v346 = vld [vmem:[%s331 + $0x60] sm:$0xff]
        %v347 = vld [vmem:[%s331 + $0x68] sm:$0xff]
        %v348 = vld [vmem:[%s331 + $0x70] sm:$0xff]
        %v349 = vld [vmem:[%s331 + $0x78] sm:$0xff]
        %v350 = vld [vmem:[%s331 + $0x80] sm:$0xff]
        %v351 = vld [vmem:[%s331 + $0x88] sm:$0xff]
        %v352 = vld [vmem:[%s331 + $0x90] sm:$0xff]
        %v353 = vld [vmem:[%s331 + $0x98] sm:$0xff]
        %v354 = vld [vmem:[%s331 + $0xa0] sm:$0xff]
        %v355 = vld [vmem:[%s331 + $0xa8] sm:$0xff]
        %v356 = vld [vmem:[%s331 + $0xb0] sm:$0xff]
        %v357 = vld [vmem:[%s331 + $0xb8] sm:$0xff]
        %v358 = vld [vmem:[%s331 + $0xc0] sm:$0xff]
        %v359 = vld [vmem:[%s331 + $0xc8] sm:$0xff]
        %v360 = vld [vmem:[%s331 + $0xd0] sm:$0xff]
        %v361 = vld [vmem:[%s331 + $0xd8] sm:$0xff]
        %v362 = vld [vmem:[%s331 + $0xe0] sm:$0xff]
        %v363 = vld [vmem:[%s331 + $0xe8] sm:$0xff]
        %v364 = vld [vmem:[%s331 + $0xf0] sm:$0xff]
        %v365 = vld [vmem:[%s331 + $0xf8] sm:$0xff]
        %v366 = vld [vmem:[%s1] sm:$0xff]
        %v367 = vld [vmem:[%s1 + $0x8] sm:$0xff]
        %v368 = vld [vmem:[%s1 + $0x10] sm:$0xff]
        %v369 = vld [vmem:[%s1 + $0x18] sm:$0xff]
        %v370 = vld [vmem:[%s1 + $0x20] sm:$0xff]
        %v371 = vld [vmem:[%s1 + $0x28] sm:$0xff]
        %v372 = vld [vmem:[%s1 + $0x30] sm:$0xff]
        %v373 = vld [vmem:[%s1 + $0x38] sm:$0xff]
        %vm374 = vcmask 80896
        %v376 = vsel %vm374, %v366, 0
        %v379 = vsel %vm374, %v367, 0
        %v382 = vsel %vm374, %v368, 0
        %v385 = vsel %vm374, %v369, 0
        %v388 = vsel %vm374, %v370, 0
        %v391 = vsel %vm374, %v371, 0
        %v394 = vsel %vm374, %v372, 0
        %v397 = vsel %vm374, %v373, 0
        %v400 = vsel %vm374, %v334, 0
        %v403 = vsel %vm374, %v335, 0
        %v406 = vsel %vm374, %v336, 0
        %v409 = vsel %vm374, %v337, 0
        %v412 = vsel %vm374, %v338, 0
        %v415 = vsel %vm374, %v339, 0
        %v418 = vsel %vm374, %v340, 0
        %v421 = vsel %vm374, %v341, 0
        %v424 = vsel %vm374, %v342, 0
        %v427 = vsel %vm374, %v343, 0
        %v430 = vsel %vm374, %v344, 0
        %v433 = vsel %vm374, %v345, 0
        %v436 = vsel %vm374, %v346, 0
        %v439 = vsel %vm374, %v347, 0
        %v442 = vsel %vm374, %v348, 0
        %v445 = vsel %vm374, %v349, 0
        %v448 = vsel %vm374, %v350, 0
        %v451 = vsel %vm374, %v351, 0
        %v454 = vsel %vm374, %v352, 0
        %v457 = vsel %vm374, %v353, 0
        %v460 = vsel %vm374, %v354, 0
        %v463 = vsel %vm374, %v355, 0
        %v466 = vsel %vm374, %v356, 0
        %v469 = vsel %vm374, %v357, 0
        %v472 = vsel %vm374, %v358, 0
        %v475 = vsel %vm374, %v359, 0
        %v478 = vsel %vm374, %v360, 0
        %v481 = vsel %vm374, %v361, 0
        %v484 = vsel %vm374, %v362, 0
        %v487 = vsel %vm374, %v363, 0
        %v490 = vsel %vm374, %v364, 0
        %v493 = vsel %vm374, %v365, 0
        %495 = vmatprep.subr.mxu0 0.0
        %496 = vmatpush1.xpose.msra.mxu0 %v445
        %497 = vmatprep.subr.mxu0 0.0
        %498 = vmatpush1.xpose.msra.mxu0 %v442
        %499 = vmatprep.subr.mxu0 0.0
        %500 = vmatpush1.xpose.msra.mxu0 %v439
        %501 = vmatprep.subr.mxu0 0.0
        %502 = vmatpush1.xpose.msra.mxu0 %v436
        %503 = vmatprep.subr.mxu0 0.0
        %504 = vmatpush1.xpose.msra.mxu0 %v433
        %505 = vmatprep.subr.mxu0 0.0
        %506 = vmatpush1.xpose.msra.mxu0 %v430
        %507 = vmatprep.subr.mxu0 0.0
        %508 = vmatpush1.xpose.msra.mxu0 %v427
        %509 = vmatprep.subr.mxu0 0.0
        %510 = vmatpush1.xpose.msra.mxu0 %v424
        %511 = vmatprep.subr.mxu0 0.0
        %512 = vmatpush1.xpose.msra.mxu0 %v421
        %513 = vmatprep.subr.mxu0 0.0
        %514 = vmatpush1.xpose.msra.mxu0 %v418
        %515 = vmatprep.subr.mxu0 0.0
        %516 = vmatpush1.xpose.msra.mxu0 %v415
        %517 = vmatprep.subr.mxu0 0.0
        %518 = vmatpush1.xpose.msra.mxu0 %v412
        %519 = vmatprep.subr.mxu0 0.0
        %520 = vmatpush1.xpose.msra.mxu0 %v409
        %521 = vmatprep.subr.mxu0 0.0
        %522 = vmatpush1.xpose.msra.mxu0 %v406
        %523 = vmatprep.subr.mxu0 0.0
        %524 = vmatpush1.xpose.msra.mxu0 %v403
        %525 = vmatprep.subr.mxu0 0.0
        %526 = vmatpush1.xpose.msra.mxu0 %v400
        %527 = vmatprep.subr.mxu0 0.0
        %528 = vmatpush2.xpose.msra.mxu0 %v493
        %529 = vmatprep.subr.mxu0 0.0
        %530 = vmatpush2.xpose.msra.mxu0 %v490
        %531 = vmatprep.subr.mxu0 0.0
        %532 = vmatpush2.xpose.msra.mxu0 %v487
        %533 = vmatprep.subr.mxu0 0.0
        %534 = vmatpush2.xpose.msra.mxu0 %v484
        %535 = vmatprep.subr.mxu0 0.0
        %536 = vmatpush2.xpose.msra.mxu0 %v481
        %537 = vmatprep.subr.mxu0 0.0
        %538 = vmatpush2.xpose.msra.mxu0 %v478
        %539 = vmatprep.subr.mxu0 0.0
        %540 = vmatpush2.xpose.msra.mxu0 %v475
        %541 = vmatprep.subr.mxu0 0.0
        %542 = vmatpush2.xpose.msra.mxu0 %v472
        %543 = vmatprep.subr.mxu0 0.0
        %544 = vmatpush2.xpose.msra.mxu0 %v469
        %545 = vmatprep.subr.mxu0 0.0
        %546 = vmatpush2.xpose.msra.mxu0 %v466
        %547 = vmatprep.subr.mxu0 0.0
        %548 = vmatpush2.xpose.msra.mxu0 %v463
        %549 = vmatprep.subr.mxu0 0.0
        %550 = vmatpush2.xpose.msra.mxu0 %v460
        %551 = vmatprep.subr.mxu0 0.0
        %552 = vmatpush2.xpose.msra.mxu0 %v457
        %553 = vmatprep.subr.mxu0 0.0
        %554 = vmatpush2.xpose.msra.mxu0 %v454
        %555 = vmatprep.subr.mxu0 0.0
        %556 = vmatpush2.xpose.msra.mxu0 %v451
        %557 = vmatprep.subr.mxu0 0.0
        %558 = vmatpush2.xpose.msra.mxu0 %v448
        %559 = vmatprep.mubr.f32.mxu0 0.0
        %560 = vmatmul.mubr.f32.gmra.mxu0 %v376
        %v561 = vpop.f32.mrf.mxu0
        %v562 = vadd.f32 0.0, %v561
        %v563 = vpop.f32.mrf.mxu0
        %v564 = vadd.f32 0.0, %v563
        %565 = vmatprep.mubr.f32.mxu0 0.0
        %566 = vmatmul.mubr.f32.gmra.mxu0 %v379
        %v567 = vpop.f32.mrf.mxu0
        %v568 = vadd.f32 0.0, %v567
        %v569 = vpop.f32.mrf.mxu0
        %v570 = vadd.f32 0.0, %v569
        %571 = vmatprep.mubr.f32.mxu0 0.0
        %572 = vmatmul.mubr.f32.gmra.mxu0 %v382
        %v573 = vpop.f32.mrf.mxu0
        %v574 = vadd.f32 0.0, %v573
        %v575 = vpop.f32.mrf.mxu0
        %v576 = vadd.f32 0.0, %v575
        %577 = vmatprep.mubr.f32.mxu0 0.0
        %578 = vmatmul.mubr.f32.gmra.mxu0 %v385
        %v579 = vpop.f32.mrf.mxu0
        %v580 = vadd.f32 0.0, %v579
        %v581 = vpop.f32.mrf.mxu0
        %v582 = vadd.f32 0.0, %v581
        %583 = vmatprep.mubr.f32.mxu0 0.0
        %584 = vmatmul.mubr.f32.gmra.mxu0 %v388
        %v585 = vpop.f32.mrf.mxu0
        %v586 = vadd.f32 0.0, %v585
        %v587 = vpop.f32.mrf.mxu0
        %v588 = vadd.f32 0.0, %v587
        %589 = vmatprep.mubr.f32.mxu0 0.0
        %590 = vmatmul.mubr.f32.gmra.mxu0 %v391
        %v591 = vpop.f32.mrf.mxu0
        %v592 = vadd.f32 0.0, %v591
        %v593 = vpop.f32.mrf.mxu0
        %v594 = vadd.f32 0.0, %v593
        %595 = vmatprep.mubr.f32.mxu0 0.0
        %596 = vmatmul.mubr.f32.gmra.mxu0 %v394
        %v597 = vpop.f32.mrf.mxu0
        %v598 = vadd.f32 0.0, %v597
        %v599 = vpop.f32.mrf.mxu0
        %v600 = vadd.f32 0.0, %v599
        %601 = vmatprep.mubr.f32.mxu0 0.0
        %602 = vmatmul.mubr.f32.gmra.mxu0 %v397
        %v603 = vpop.f32.mrf.mxu0
        %v604 = vadd.f32 0.0, %v603
        %v605 = vpop.f32.mrf.mxu0
        %v606 = vadd.f32 0.0, %v605
        %607 = vdwg.mxu0
        %v608 = vld [vmem:[%s5] sm:$0xff]
        %v609 = vld [vmem:[%s5 + $0x8] sm:$0xff]
        %v610 = vld [vmem:[%s5 + $0x10] sm:$0xff]
        %v611 = vld [vmem:[%s5 + $0x18] sm:$0xff]
        %613 = vset.pattern.permute.xlu0 0
        %614 = vperm.xlu0 %613, %v608
        %v615 = vpop.permute.xlu0 %614
        %618 = vset.pattern.permute.xlu0 0
        %619 = vperm.xlu0 %618, %v609
        %v620 = vpop.permute.xlu0 %619
        %623 = vset.pattern.permute.xlu0 0
        %624 = vperm.xlu0 %623, %v610
        %v625 = vpop.permute.xlu0 %624
        %628 = vset.pattern.permute.xlu0 0
        %629 = vperm.xlu0 %628, %v611
        %v630 = vpop.permute.xlu0 %629
        %v632 = vadd.f32 %v562, %v615
        %v633 = vadd.f32 %v564, %v615
        %v634 = vadd.f32 %v568, %v620
        %v635 = vadd.f32 %v570, %v620
        %v636 = vadd.f32 %v574, %v625
        %v637 = vadd.f32 %v576, %v625
        %v638 = vadd.f32 %v580, %v630
        %v639 = vadd.f32 %v582, %v630
        %v640 = vmax.f32 %v632, 0.0
        %v641 = vmax.f32 %v633, 0.0
        %v642 = vmax.f32 %v634, 0.0
        %v643 = vmax.f32 %v635, 0.0
        %v644 = vmax.f32 %v636, 0.0
        %v645 = vmax.f32 %v637, 0.0
        %v646 = vmax.f32 %v638, 0.0
        %v647 = vmax.f32 %v639, 0.0
        %v648 = vld [vmem:[%s2] sm:$0xff]
        %v649 = vld [vmem:[%s2 + $0x8] sm:$0xff]
        %v650 = vld [vmem:[%s2 + $0x10] sm:$0xff]
        %v651 = vld [vmem:[%s2 + $0x18] sm:$0xff]
        %v652 = vld [vmem:[%s6] sm:$0xff]
        %v653 = vld [vmem:[%s6 + $0x8] sm:$0xff]
        %v654 = vld [vmem:[%s6 + $0x10] sm:$0xff]
        %v655 = vld [vmem:[%s6 + $0x18] sm:$0xff]
        %657 = vset.pattern.permute.xlu0 0
        %658 = vperm.xlu0 %657, %v652
        %v659 = vpop.permute.xlu0 %658
        %662 = vset.pattern.permute.xlu0 0
        %663 = vperm.xlu0 %662, %v653
        %v664 = vpop.permute.xlu0 %663
        %667 = vset.pattern.permute.xlu0 0
        %668 = vperm.xlu0 %667, %v654
        %v669 = vpop.permute.xlu0 %668
        %672 = vset.pattern.permute.xlu0 0
        %673 = vperm.xlu0 %672, %v655
        %v674 = vpop.permute.xlu0 %673
        %vm676 = vcmask 261120
        %v678 = vsel %vm676, %v648, 0
        %v681 = vsel %vm676, %v649, 0
        %v684 = vsel %vm676, %v650, 0
        %v687 = vsel %vm676, %v651, 0
        %689 = vmatprep.subr.mxu0 0.0
        %690 = vmatpush1.msra.mxu0 0.0
        %691 = vmatprep.subr.mxu0 0.0
        %692 = vmatpush1.msra.mxu0 0.0
        %693 = vmatprep.subr.mxu0 0.0
        %694 = vmatpush1.msra.mxu0 0.0
        %695 = vmatprep.subr.mxu0 0.0
        %696 = vmatpush1.msra.mxu0 0.0
        %697 = vmatprep.subr.mxu0 0.0
        %698 = vmatpush1.msra.mxu0 0.0
        %699 = vmatprep.subr.mxu0 0.0
        %700 = vmatpush1.msra.mxu0 0.0
        %701 = vmatprep.subr.mxu0 0.0
        %702 = vmatpush1.msra.mxu0 0.0
        %703 = vmatprep.subr.mxu0 0.0
        %704 = vmatpush1.msra.mxu0 0.0
        %705 = vmatprep.subr.mxu0 0.0
        %706 = vmatpush1.msra.mxu0 0.0
        %707 = vmatprep.subr.mxu0 0.0
        %708 = vmatpush1.msra.mxu0 0.0
        %709 = vmatprep.subr.mxu0 0.0
        %710 = vmatpush1.msra.mxu0 0.0
        %711 = vmatprep.subr.mxu0 0.0
        %712 = vmatpush1.msra.mxu0 0.0
        %713 = vmatprep.subr.mxu0 %v647
        %714 = vmatpush1.msra.mxu0 %v646
        %715 = vmatprep.subr.mxu0 %v645
        %716 = vmatpush1.msra.mxu0 %v644
        %717 = vmatprep.subr.mxu0 %v643
        %718 = vmatpush1.msra.mxu0 %v642
        %719 = vmatprep.subr.mxu0 %v641
        %720 = vmatpush1.msra.mxu0 %v640
        %721 = vmatprep.subr.mxu0 0.0
        %722 = vmatpush2.msra.mxu0 0.0
        %723 = vmatprep.subr.mxu0 0.0
        %724 = vmatpush2.msra.mxu0 0.0
        %725 = vmatprep.subr.mxu0 0.0
        %726 = vmatpush2.msra.mxu0 0.0
        %727 = vmatprep.subr.mxu0 0.0
        %728 = vmatpush2.msra.mxu0 0.0
        %729 = vmatprep.subr.mxu0 0.0
        %730 = vmatpush2.msra.mxu0 0.0
        %731 = vmatprep.subr.mxu0 0.0
        %732 = vmatpush2.msra.mxu0 0.0
        %733 = vmatprep.subr.mxu0 0.0
        %734 = vmatpush2.msra.mxu0 0.0
        %735 = vmatprep.subr.mxu0 0.0
        %736 = vmatpush2.msra.mxu0 0.0
        %737 = vmatprep.subr.mxu0 0.0
        %738 = vmatpush2.msra.mxu0 0.0
        %739 = vmatprep.subr.mxu0 0.0
        %740 = vmatpush2.msra.mxu0 0.0
        %741 = vmatprep.subr.mxu0 0.0
        %742 = vmatpush2.msra.mxu0 0.0
        %743 = vmatprep.subr.mxu0 0.0
        %744 = vmatpush2.msra.mxu0 0.0
        %745 = vmatprep.subr.mxu0 0.0
        %746 = vmatpush2.msra.mxu0 0.0
        %747 = vmatprep.subr.mxu0 0.0
        %748 = vmatpush2.msra.mxu0 0.0
        %749 = vmatprep.subr.mxu0 0.0
        %750 = vmatpush2.msra.mxu0 0.0
        %751 = vmatprep.subr.mxu0 0.0
        %752 = vmatpush2.msra.mxu0 0.0
        %753 = vmatprep.mubr.f32.mxu0 0.0
        %754 = vmatmul.mubr.f32.gmra.mxu0 %v678
        %v755 = vpop.f32.mrf.mxu0
        %v756 = vadd.f32 %v659, %v755
        %v757 = vpop.f32.mrf.mxu0
        %v758 = vadd.f32 %v659, %v757
        %759 = vmatprep.mubr.f32.mxu0 0.0
        %760 = vmatmul.mubr.f32.gmra.mxu0 %v681
        %v761 = vpop.f32.mrf.mxu0
        %v762 = vadd.f32 %v664, %v761
        %v763 = vpop.f32.mrf.mxu0
        %v764 = vadd.f32 %v664, %v763
        %765 = vmatprep.mubr.f32.mxu0 0.0
        %766 = vmatmul.mubr.f32.gmra.mxu0 %v684
        %v767 = vpop.f32.mrf.mxu0
        %v768 = vadd.f32 %v669, %v767
        %v769 = vpop.f32.mrf.mxu0
        %v770 = vadd.f32 %v669, %v769
        %771 = vmatprep.mubr.f32.mxu0 0.0
        %772 = vmatmul.mubr.f32.gmra.mxu0 %v687
        %v773 = vpop.f32.mrf.mxu0
        %v774 = vadd.f32 %v674, %v773
        %v775 = vpop.f32.mrf.mxu0
        %v776 = vadd.f32 %v674, %v775
        %777 = vdwg.mxu0
        %v778 = vmax.f32 %v756, 0.0
        %v779 = vmax.f32 %v758, 0.0
        %v780 = vmax.f32 %v762, 0.0
        %v781 = vmax.f32 %v764, 0.0
        %v782 = vmax.f32 %v768, 0.0
        %v783 = vmax.f32 %v770, 0.0
        %v784 = vmax.f32 %v774, 0.0
        %v785 = vmax.f32 %v776, 0.0
        %v786 = vld [vmem:[%s3] sm:$0xff]
        %v787 = vld [vmem:[%s3 + $0x8] sm:$0xff]
        %v788 = vld [vmem:[%s3 + $0x10] sm:$0xff]
        %v789 = vld [vmem:[%s3 + $0x18] sm:$0xff]
        %v791 = vsel %vm676, %v786, 0
        %v794 = vsel %vm676, %v787, 0
        %v797 = vsel %vm676, %v788, 0
        %v800 = vsel %vm676, %v789, 0
        %802 = vmatprep.subr.mxu0 0.0
        %803 = vmatpush1.msra.mxu0 0.0
        %804 = vmatprep.subr.mxu0 0.0
        %805 = vmatpush1.msra.mxu0 0.0
        %806 = vmatprep.subr.mxu0 0.0
        %807 = vmatpush1.msra.mxu0 0.0
        %808 = vmatprep.subr.mxu0 0.0
        %809 = vmatpush1.msra.mxu0 0.0
        %810 = vmatprep.subr.mxu0 0.0
        %811 = vmatpush1.msra.mxu0 0.0
        %812 = vmatprep.subr.mxu0 0.0
        %813 = vmatpush1.msra.mxu0 0.0
        %814 = vmatprep.subr.mxu0 0.0
        %815 = vmatpush1.msra.mxu0 0.0
        %816 = vmatprep.subr.mxu0 0.0
        %817 = vmatpush1.msra.mxu0 0.0
        %818 = vmatprep.subr.mxu0 0.0
        %819 = vmatpush1.msra.mxu0 0.0
        %820 = vmatprep.subr.mxu0 0.0
        %821 = vmatpush1.msra.mxu0 0.0
        %822 = vmatprep.subr.mxu0 0.0
        %823 = vmatpush1.msra.mxu0 0.0
        %824 = vmatprep.subr.mxu0 0.0
        %825 = vmatpush1.msra.mxu0 0.0
        %826 = vmatprep.subr.mxu0 %v785
        %827 = vmatpush1.msra.mxu0 %v784
        %828 = vmatprep.subr.mxu0 %v783
        %829 = vmatpush1.msra.mxu0 %v782
        %830 = vmatprep.subr.mxu0 %v781
        %831 = vmatpush1.msra.mxu0 %v780
        %832 = vmatprep.subr.mxu0 %v779
        %833 = vmatpush1.msra.mxu0 %v778
        %834 = vmatprep.subr.mxu0 0.0
        %835 = vmatpush2.msra.mxu0 0.0
        %836 = vmatprep.subr.mxu0 0.0
        %837 = vmatpush2.msra.mxu0 0.0
        %838 = vmatprep.subr.mxu0 0.0
        %839 = vmatpush2.msra.mxu0 0.0
        %840 = vmatprep.subr.mxu0 0.0
        %841 = vmatpush2.msra.mxu0 0.0
        %842 = vmatprep.subr.mxu0 0.0
        %843 = vmatpush2.msra.mxu0 0.0
        %844 = vmatprep.subr.mxu0 0.0
        %845 = vmatpush2.msra.mxu0 0.0
        %846 = vmatprep.subr.mxu0 0.0
        %847 = vmatpush2.msra.mxu0 0.0
        %848 = vmatprep.subr.mxu0 0.0
        %849 = vmatpush2.msra.mxu0 0.0
        %850 = vmatprep.subr.mxu0 0.0
        %851 = vmatpush2.msra.mxu0 0.0
        %852 = vmatprep.subr.mxu0 0.0
        %853 = vmatpush2.msra.mxu0 0.0
        %854 = vmatprep.subr.mxu0 0.0
        %855 = vmatpush2.msra.mxu0 0.0
        %856 = vmatprep.subr.mxu0 0.0
        %857 = vmatpush2.msra.mxu0 0.0
        %858 = vmatprep.subr.mxu0 0.0
        %859 = vmatpush2.msra.mxu0 0.0
        %860 = vmatprep.subr.mxu0 0.0
        %861 = vmatpush2.msra.mxu0 0.0
        %862 = vmatprep.subr.mxu0 0.0
        %863 = vmatpush2.msra.mxu0 0.0
        %864 = vmatprep.subr.mxu0 0.0
        %865 = vmatpush2.msra.mxu0 0.0
        %866 = vmatprep.mubr.f32.mxu0 0.0
        %867 = vmatmul.mubr.f32.gmra.mxu0 %v791
        %v868 = vpop.f32.mrf.mxu0
        %v869 = vadd.f32 %v586, %v868
        %v870 = vpop.f32.mrf.mxu0
        %v871 = vadd.f32 %v588, %v870
        %872 = vmatprep.mubr.f32.mxu0 0.0
        %873 = vmatmul.mubr.f32.gmra.mxu0 %v794
        %v874 = vpop.f32.mrf.mxu0
        %v875 = vadd.f32 %v592, %v874
        %v876 = vpop.f32.mrf.mxu0
        %v877 = vadd.f32 %v594, %v876
        %878 = vmatprep.mubr.f32.mxu0 0.0
        %879 = vmatmul.mubr.f32.gmra.mxu0 %v797
        %v880 = vpop.f32.mrf.mxu0
        %v881 = vadd.f32 %v598, %v880
        %v882 = vpop.f32.mrf.mxu0
        %v883 = vadd.f32 %v600, %v882
        %884 = vmatprep.mubr.f32.mxu0 0.0
        %885 = vmatmul.mubr.f32.gmra.mxu0 %v800
        %v886 = vpop.f32.mrf.mxu0
        %v887 = vadd.f32 %v604, %v886
        %v888 = vpop.f32.mrf.mxu0
        %v889 = vadd.f32 %v606, %v888
        %890 = vdwg.mxu0
        %v891 = vld [vmem:[%s7] sm:$0xff]
        %v892 = vld [vmem:[%s7 + $0x8] sm:$0xff]
        %v893 = vld [vmem:[%s7 + $0x10] sm:$0xff]
        %v894 = vld [vmem:[%s7 + $0x18] sm:$0xff]
        %896 = vset.pattern.permute.xlu0 0
        %897 = vperm.xlu0 %896, %v891
        %v898 = vpop.permute.xlu0 %897
        %901 = vset.pattern.permute.xlu0 0
        %902 = vperm.xlu0 %901, %v892
        %v903 = vpop.permute.xlu0 %902
        %906 = vset.pattern.permute.xlu0 0
        %907 = vperm.xlu0 %906, %v893
        %v908 = vpop.permute.xlu0 %907
        %911 = vset.pattern.permute.xlu0 0
        %912 = vperm.xlu0 %911, %v894
        %v913 = vpop.permute.xlu0 %912
        %v915 = vadd.f32 %v869, %v898
        %v916 = vadd.f32 %v871, %v898
        %v917 = vadd.f32 %v875, %v903
        %v918 = vadd.f32 %v877, %v903
        %v919 = vadd.f32 %v881, %v908
        %v920 = vadd.f32 %v883, %v908
        %v921 = vadd.f32 %v887, %v913
        %v922 = vadd.f32 %v889, %v913
        %v923 = vmax.f32 %v915, 0.0
        %v924 = vmax.f32 %v916, 0.0
        %v925 = vmax.f32 %v917, 0.0
        %v926 = vmax.f32 %v918, 0.0
        %v927 = vmax.f32 %v919, 0.0
        %v928 = vmax.f32 %v920, 0.0
        %v929 = vmax.f32 %v921, 0.0
        %v930 = vmax.f32 %v922, 0.0
        %v931 = vld [vmem:[%s4] sm:$0x3]
        %v932 = vld [vmem:[%s8] sm:$0x3]
        %934 = vset.pattern.permute.xlu0 0
        %935 = vperm.xlu0 %934, %v932
        %v936 = vpop.permute.xlu0 %935
        %v939 = vsel %vm676, %v931, 0
        %941 = vmatprep.subr.mxu0 0.0
        %942 = vmatpush1.msra.mxu0 0.0
        %943 = vmatprep.subr.mxu0 0.0
        %944 = vmatpush1.msra.mxu0 0.0
        %945 = vmatprep.subr.mxu0 0.0
        %946 = vmatpush1.msra.mxu0 0.0
        %947 = vmatprep.subr.mxu0 0.0
        %948 = vmatpush1.msra.mxu0 0.0
        %949 = vmatprep.subr.mxu0 0.0
        %950 = vmatpush1.msra.mxu0 0.0
        %951 = vmatprep.subr.mxu0 0.0
        %952 = vmatpush1.msra.mxu0 0.0
        %953 = vmatprep.subr.mxu0 0.0
        %954 = vmatpush1.msra.mxu0 0.0
        %955 = vmatprep.subr.mxu0 0.0
        %956 = vmatpush1.msra.mxu0 0.0
        %957 = vmatprep.subr.mxu0 0.0
        %958 = vmatpush1.msra.mxu0 0.0
        %959 = vmatprep.subr.mxu0 0.0
        %960 = vmatpush1.msra.mxu0 0.0
        %961 = vmatprep.subr.mxu0 0.0
        %962 = vmatpush1.msra.mxu0 0.0
        %963 = vmatprep.subr.mxu0 0.0
        %964 = vmatpush1.msra.mxu0 0.0
        %965 = vmatprep.subr.mxu0 %v930
        %966 = vmatpush1.msra.mxu0 %v929
        %967 = vmatprep.subr.mxu0 %v928
        %968 = vmatpush1.msra.mxu0 %v927
        %969 = vmatprep.subr.mxu0 %v926
        %970 = vmatpush1.msra.mxu0 %v925
        %971 = vmatprep.subr.mxu0 %v924
        %972 = vmatpush1.msra.mxu0 %v923
        %973 = vmatprep.subr.mxu0 0.0
        %974 = vmatpush2.msra.mxu0 0.0
        %975 = vmatprep.subr.mxu0 0.0
        %976 = vmatpush2.msra.mxu0 0.0
        %977 = vmatprep.subr.mxu0 0.0
        %978 = vmatpush2.msra.mxu0 0.0
        %979 = vmatprep.subr.mxu0 0.0
        %980 = vmatpush2.msra.mxu0 0.0
        %981 = vmatprep.subr.mxu0 0.0
        %982 = vmatpush2.msra.mxu0 0.0
        %983 = vmatprep.subr.mxu0 0.0
        %984 = vmatpush2.msra.mxu0 0.0
        %985 = vmatprep.subr.mxu0 0.0
        %986 = vmatpush2.msra.mxu0 0.0
        %987 = vmatprep.subr.mxu0 0.0
        %988 = vmatpush2.msra.mxu0 0.0
        %989 = vmatprep.subr.mxu0 0.0
        %990 = vmatpush2.msra.mxu0 0.0
        %991 = vmatprep.subr.mxu0 0.0
        %992 = vmatpush2.msra.mxu0 0.0
        %993 = vmatprep.subr.mxu0 0.0
        %994 = vmatpush2.msra.mxu0 0.0
        %995 = vmatprep.subr.mxu0 0.0
        %996 = vmatpush2.msra.mxu0 0.0
        %997 = vmatprep.subr.mxu0 0.0
        %998 = vmatpush2.msra.mxu0 0.0
        %999 = vmatprep.subr.mxu0 0.0
        %1000 = vmatpush2.msra.mxu0 0.0
        %1001 = vmatprep.subr.mxu0 0.0
        %1002 = vmatpush2.msra.mxu0 0.0
        %1003 = vmatprep.subr.mxu0 0.0
        %1004 = vmatpush2.msra.mxu0 0.0
        %1005 = vmatprep.mubr.f32.mxu0 0.0
        %1006 = vmatmul.mubr.f32.gmra.mxu0 %v939
        %v1007 = vpop.f32.mrf.mxu0
        %v1008 = vadd.f32 %v936, %v1007
        %v1009 = vpop.f32.mrf.mxu0
        %v1010 = vadd.f32 %v936, %v1009
        %1011 = vdwg.mxu0
        %v1014 = vcombine.low %v1008, %v1010
        %v1016 = vunpack.c.l.s4 1983009808
        %v1017 = vunpack.c.0.s8 %v1016
        %v1018 = vlaneseq
        %v1019 = vshrl.u32 %v1018, 7
        %v1020 = vsub.s32 %v1017, %v1019
        %v1021 = vrot.slane %v1014, %v1020
        %1023 = vst [vmem:[%s326] sm:$0xf] %v1021
        %s1024 = sand.u32 %s225, 1
        %s1025 = scalar_lea.sflag [#allocation3], %s1024
        %s1026 = sand.u32 %s225, 1
        %s1027 = smul.addr %s1026, 4
        %s1028 = scalar_lea.vmem [#allocation2], %s1027
        // Predicated region
        $region57: #{tpu_custom_call.1} parent=55 // pred_check
          %p1029 = pneg %p235
        $region58: #{tpu_custom_call.1} parent=55 // pred_check_branch
          %1031 = sbr.rel (%p1029) target = $region60
        $region59: #{tpu_custom_call.1} parent=55 // pred_region
          %s1032 = smul.u32 2, %s23
          %s1034 = ssub.s32 64, 64
          %1035 = vsyncadd %s1025, %s1034
          %s1036 = smul.addr %s1032, 32
          %s1037 = scalar_lea.hbm %s9, %s1036
          %s1039 = sshll.u32 %s1028, 4
          %s1040 = int_to_ptr.vmem [resolvable:$true] %s1039
          %1042 = dma.vmem_to_hbm [thread:$0]  %s1040, 64, %s1037, %s1025
        $region60: #{tpu_custom_call.1} parent=55 // pred_fallthru
          _
      $region56: #{tpu_custom_call.1} parent=5 // pred_fallthru
        _
      %p1043 = scmp.le.s32.totalorder 2, %s18
      // Predicated region
      $region61: #{tpu_custom_call.1} parent=5 // pred_check
        %p1044 = pneg %p1043
      $region62: #{tpu_custom_call.1} parent=5 // pred_check_branch
        %1046 = sbr.rel (%p1044) target = $region64
      $region63: #{tpu_custom_call.1} parent=5 // pred_region
        %s1047 = ssub.s32 %s18, 2
        // Predicated region
        $region65: #{tpu_custom_call.1} parent=63 // pred_check
          %p1048 = pneg %p241
        $region66: #{tpu_custom_call.1} parent=63 // pred_check_branch
          %1050 = sbr.rel (%p1048) target = $region68
        $region67: #{tpu_custom_call.1} parent=63 // pred_region
          %s1051 = sand.u32 %s226, 1
          %s1052 = scalar_lea.sflag [#allocation3], %s1051
          %s1053 = sand.u32 %s226, 1
          %s1054 = smul.addr %s1053, 4
          %s1055 = scalar_lea.vmem [#allocation2], %s1054
          %1056 = dma.done %s1052, 64
        $region68: #{tpu_custom_call.1} parent=63 // pred_fallthru
          _
      $region64: #{tpu_custom_call.1} parent=5 // pred_fallthru
        _
    $region6: #{tpu_custom_call.1} parent=1 // loop_footer
      %s22 = sadd.s32 1, %s18
    $region7: #{tpu_custom_call.1} parent=1 // loop_footer_branch
      %17 = sbr.rel target = $region3
    $region8: #{tpu_custom_call.1} parent=1 // loop_exit
      _
    %1057 = vsyncpa [#allocation3], 1
    %s1058 = scalar_lea.sflag [#allocation3], 1
    %1059 = vsyncpa %s1058, 1

</llo_original>
